<compile_context>
chip_gen: v5e
topology: v5e:2x2
jax: 0.10.0
libtpu: 0.0.40
codegen_flags: <defaults>
</compile_context>

<pallas_src>
import jax
import jax.numpy as jnp
from jax import lax
from jax.experimental import pallas as pl
from jax.experimental.pallas import tpu as pltpu


def _round_up(n: int, m: int) -> int:
    return ((n + m - 1) // m) * m


# Double-buffered x tile at the cap: 2 * 32768 * 128 lanes * 4 B = 32 MiB,
# which (plus output buffers + weights + headroom) fits v7x's 64 MiB VMEM.
_TILE_CAP = 32768


def mlp_kernel(x_ref, w1t_ref, b1_ref, w2_ref, b2_ref, o_ref):
    # x_ref  : (TILE_B, 13)   streamed batch tile
    # w1t_ref: (13, 10)       resident, pre-transposed layer-1 weights
    # b1_ref : (1, 10)        resident
    # w2_ref : (1, 10)        resident (PyTorch (out, in) layout)
    # b2_ref : (1, 1) SMEM    scalar
    # o_ref  : (1, TILE_B)    lane-dense output row
    x = x_ref[...]

    # layer 1: (TILE_B,13) @ (13,10) on the MXU, f32 accumulate.
    h = jnp.dot(x, w1t_ref[...], preferred_element_type=jnp.float32)   # (TILE_B, 10)
    h = jnp.maximum(h + b1_ref[...], 0.0)                              # bias + ReLU (VPU)

    # layer 2 in transposed orientation: (1,10) contracted with (TILE_B,10) on
    # the hidden dim -> (1, TILE_B).  Output batch lives on lanes, so stores are
    # full-lane instead of tile_b/8 masked single-lane stores.
    y = lax.dot_general(w2_ref[...], h, (((1,), (1,)), ((), ())),
                        preferred_element_type=jnp.float32)            # (1, TILE_B)

    o_ref[...] = (y + b2_ref[0, 0]).astype(o_ref.dtype)


def _select_tile(batch: int, tile_b: int):
    """Pick a legal batch tile and grid size (no input padding needed)."""
    t = _round_up(max(min(tile_b, _TILE_CAP), 128), 128)
    if t >= batch:
        if batch >= 256:
            # Keep >= 2 grid steps so ("parallel",) can shard across both
            # TensorCores on v7x; costs at most one extra ~0.35us step elsewhere.
            t = _round_up(pl.cdiv(batch, 2), 128)
        else:
            # Block == full array: always a legal block shape, single step.
            t = batch
    return t, pl.cdiv(batch, t)


def nonlinear_model(x, w1, b1, w2, b2, *, tile_b=_TILE_CAP):
    """Forward pass matching the PyTorch NonLinearModel.

    x  : (B, 13)  float32
    w1 : (10, 13) float32   (PyTorch layout: (out, in))
    b1 : (10,)    float32
    w2 : (1, 10)  float32
    b2 : (1,)     float32
    returns (B, 1) float32
    """
    B, F = x.shape
    H = w1.shape[0]  # hidden = 10

    t, grid = _select_tile(B, tile_b)

    # Scoped-VMEM budget: double-buffered x tile (13 lanes pad to 128 in VMEM),
    # double-buffered (1, t) output row (1 sublane pads to 8), weights + slack.
    vmem_need = 2 * t * 128 * 4 + 2 * 8 * t * 4 + (4 << 20)
    vmem_limit = int(min(max(vmem_need, 16 << 20), 48 << 20))

    out_row = pl.pallas_call(
        mlp_kernel,
        out_shape=jax.ShapeDtypeStruct((1, B), jnp.float32),
        grid=(grid,),
        in_specs=[
            pl.BlockSpec((t, F), lambda i: (i, 0)),             # x: streamed over batch
            pl.BlockSpec((F, H), lambda i: (0, 0)),             # w1^T: VMEM-resident
            pl.BlockSpec((1, H), lambda i: (0, 0)),             # b1 : VMEM-resident
            pl.BlockSpec((1, H), lambda i: (0, 0)),             # w2 : VMEM-resident
            pl.BlockSpec(memory_space=pltpu.MemorySpace.SMEM),  # b2 : scalar in SMEM
        ],
        out_specs=pl.BlockSpec((1, t), lambda i: (0, i)),
        compiler_params=pltpu.CompilerParams(
            dimension_semantics=("parallel",),
            vmem_limit_bytes=vmem_limit),
    )(x, w1.T, b1.reshape(1, H), w2, b2.reshape(1, 1))

    # (1, B) -> (B, 1) is a layout-identical (free) reshape.
    return out_row.reshape(B, 1)


def reference(x, w1, b1, w2, b2):
    return jnp.maximum(x @ w1.T + b1, 0.0) @ w2.T + b2


if __name__ == "__main__":
    key = jax.random.PRNGKey(0)
    kw1, kb1, kw2, kb2, kx1, kx2, kx3 = jax.random.split(key, 7)

    # Deterministic params mimicking PyTorch's U(-1/sqrt(fan_in), 1/sqrt(fan_in)).
    bound1 = 1.0 / jnp.sqrt(13.0)
    bound2 = 1.0 / jnp.sqrt(10.0)
    w1 = jax.random.uniform(kw1, (10, 13), jnp.float32, -bound1, bound1)
    b1 = jax.random.uniform(kb1, (10,), jnp.float32, -bound1, bound1)
    w2 = jax.random.uniform(kw2, (1, 10), jnp.float32, -bound2, bound2)
    b2 = jax.random.uniform(kb2, (1,), jnp.float32, -bound2, bound2)

    def check(B, k, **kw):
        x = jax.random.normal(k, (B, 13), dtype=jnp.float32)
        out = jax.block_until_ready(nonlinear_model(x, w1, b1, w2, b2, **kw))
        ref = reference(x, w1, b1, w2, b2)
        assert out.shape == (B, 1)
        assert jnp.allclose(out, ref, atol=1e-5, rtol=1e-5)

    check(8, kx1)                 # single block == full array (tiny tabular batch)
    check(300, kx2)               # 2-step split grid, clipped (non-dividing) final block
    check(1000, kx3, tile_b=128)  # 8-step pipelined grid with clipped final block

    print("KERNEL_OK")
</pallas_src>

<mosaic_0001>
module attributes {stable_mosaic.version = 11 : i64} {
  func.func @mlp_kernel(%arg0: i32, %arg1: memref<8x13xf32, #tpu.memory_space<vmem>>, %arg2: memref<13x10xf32, #tpu.memory_space<vmem>>, %arg3: memref<1x10xf32, #tpu.memory_space<vmem>>, %arg4: memref<1x10xf32, #tpu.memory_space<vmem>>, %arg5: memref<1x1xf32, #tpu.memory_space<smem>>, %arg6: memref<1x8xf32, #tpu.memory_space<vmem>>) attributes {dimension_semantics = [#tpu.dimension_semantics<parallel>], iteration_bounds = array<i64: 1>, scalar_prefetch = 0 : i64, scratch_operands = 0 : i64, tpu.core_type = #tpu.core_type<tc>, window_params = [{transform_indices = @transform_0, window_bounds = array<i64: 8, 13>}, {pipeline_mode = #tpu.pipeline_mode<synchronous>, transform_indices = @transform_1, window_bounds = array<i64: 13, 10>}, {pipeline_mode = #tpu.pipeline_mode<synchronous>, transform_indices = @transform_2, window_bounds = array<i64: 1, 10>}, {pipeline_mode = #tpu.pipeline_mode<synchronous>, transform_indices = @transform_3, window_bounds = array<i64: 1, 10>}, {transform_indices = @transform_4, window_bounds = array<i64: 1, 1>}, {transform_indices = @transform_5, window_bounds = array<i64: 1, 8>}]} {
    %c0 = arith.constant 0 : index
    %c0_0 = arith.constant 0 : index
    %0 = vector.load %arg1[%c0, %c0_0] : memref<8x13xf32, #tpu.memory_space<vmem>>, vector<8x13xf32>
    %c0_1 = arith.constant 0 : index
    %c0_2 = arith.constant 0 : index
    %1 = vector.load %arg2[%c0_1, %c0_2] : memref<13x10xf32, #tpu.memory_space<vmem>>, vector<13x10xf32>
    %cst = arith.constant dense<0.000000e+00> : vector<8x10xf32>
    %2 = tpu.matmul %0, %1, %cst {dimension_numbers = #tpu.dot_dimension_numbers<[1], [0], [0], [1], [0, 0, 1, 1], [], []>} : vector<8x13xf32>, vector<13x10xf32>, vector<8x10xf32> -> vector<8x10xf32>
    %c0_3 = arith.constant 0 : index
    %c0_4 = arith.constant 0 : index
    %3 = vector.load %arg3[%c0_3, %c0_4] : memref<1x10xf32, #tpu.memory_space<vmem>>, vector<1x10xf32>
    %4 = vector.broadcast %3 : vector<1x10xf32> to vector<8x10xf32>
    %5 = arith.addf %2, %4 : vector<8x10xf32>
    %cst_5 = arith.constant 0.000000e+00 : f32
    %6 = vector.broadcast %cst_5 : f32 to vector<8x10xf32>
    %7 = arith.maximumf %5, %6 : vector<8x10xf32>
    %c0_6 = arith.constant 0 : index
    %c0_7 = arith.constant 0 : index
    %8 = vector.load %arg4[%c0_6, %c0_7] : memref<1x10xf32, #tpu.memory_space<vmem>>, vector<1x10xf32>
    %cst_8 = arith.constant dense<0.000000e+00> : vector<1x8xf32>
    %9 = tpu.matmul %8, %7, %cst_8 {dimension_numbers = #tpu.dot_dimension_numbers<[1], [1], [0], [0], [0, 0, 1, 0], [], []>} : vector<1x10xf32>, vector<8x10xf32>, vector<1x8xf32> -> vector<1x8xf32>
    %c0_9 = arith.constant 0 : index
    %c0_10 = arith.constant 0 : index
    %10 = memref.load %arg5[%c0_9, %c0_10] : memref<1x1xf32, #tpu.memory_space<smem>>
    %11 = vector.broadcast %10 : f32 to vector<1x8xf32>
    %12 = arith.addf %9, %11 : vector<1x8xf32>
    %c0_11 = arith.constant 0 : index
    %c0_12 = arith.constant 0 : index
    %13 = vector.load %arg6[%c0_11, %c0_12] : memref<1x8xf32, #tpu.memory_space<vmem>>, vector<1x8xf32>
    tpu.vector_store %arg6[%c0_11, %c0_12], %12 {strides = array<i32>} : memref<1x8xf32, #tpu.memory_space<vmem>>, vector<1x8xf32>,
    return
  }
  func.func @transform_0(%arg0: i32) -> (i32, i32) {
    %c0_i32 = arith.constant 0 : i32
    %c0_i32_0 = arith.constant 0 : i32
    return %arg0, %c0_i32 : i32, i32
  }
  func.func @transform_1(%arg0: i32) -> (i32, i32) {
    %c0_i32 = arith.constant 0 : i32
    %c0_i32_0 = arith.constant 0 : i32
    %c0_i32_1 = arith.constant 0 : i32
    return %c0_i32, %c0_i32_0 : i32, i32
  }
  func.func @transform_2(%arg0: i32) -> (i32, i32) {
    %c0_i32 = arith.constant 0 : i32
    %c0_i32_0 = arith.constant 0 : i32
    %c0_i32_1 = arith.constant 0 : i32
    return %c0_i32, %c0_i32_0 : i32, i32
  }
  func.func @transform_3(%arg0: i32) -> (i32, i32) {
    %c0_i32 = arith.constant 0 : i32
    %c0_i32_0 = arith.constant 0 : i32
    %c0_i32_1 = arith.constant 0 : i32
    return %c0_i32, %c0_i32_0 : i32, i32
  }
  func.func @transform_4(%arg0: i32) -> (i32, i32) {
    %c0_i32 = arith.constant 0 : i32
    %c0_i32_0 = arith.constant 0 : i32
    %c0_i32_1 = arith.constant 0 : i32
    return %c0_i32, %c0_i32_0 : i32, i32
  }
  func.func @transform_5(%arg0: i32) -> (i32, i32) {
    %c0_i32 = arith.constant 0 : i32
    %c0_i32_0 = arith.constant 0 : i32
    return %c0_i32, %arg0 : i32, i32
  }
}

</mosaic_0001>

<llo_original>
// kernel: tpu_custom_call.1
$region0: #{tpu_custom_call.1}
  #allocation0 [shape = 'u32[]', space=smem, size = 0x4, offset = 0x4, fixed_abs, tag = 'smem constant byte address 0x4 - core index']
  #allocation1 [shape = 'u32[72,128]{1,0:T(1,128)}', space=vmem, size = 0x9000, scoped, tag = 'internal scratch']
  #allocation2 [shape = 'f32[1,1]{1,0:T(1,128)S(6)}', space=smem, size = 0x200, scoped, tag = 'scoped memory for tpu_custom_call.1']
  %s0 = inlined_call_operand.hbm [shape: f32[8,13], index: 0, kind: input, shape index: {}]
  %s1 = inlined_call_operand.hbm [shape: f32[13,10], index: 1, kind: input, shape index: {}]
  %s2 = inlined_call_operand.vmem [shape: f32[1,10], index: 2, kind: input, shape index: {}]
  %s3 = inlined_call_operand.vmem [shape: f32[1,10], index: 3, kind: input, shape index: {}]
  %s4 = inlined_call_operand.<no memory space> [shape: f32[1,1], index: 4, kind: input, shape index: {}]
  %s5 = inlined_call_operand.hbm [shape: f32[1,8], index: 5, kind: output, shape index: {}]
  %s6 = sld [smem:[#allocation0]]
  $region38: #{tpu_custom_call.1} parent=0
    _
  %s8 = ssub.s32 1, %s6
  %s9 = scalar_select 0, %s8, %s6
  %10 = sst [smem:[#allocation2]] %s4
  $region1: #{tpu_custom_call.1} parent=0
    #allocation3 [shape = 'u8[4096]{0}', space=vmem, size = 0x1000, scoped, tag = 'input window, operand 0, single buffered']
    #allocation4 [shape = 's32[1]{0}', space=sflag, size = 0x4, scoped, tag = 'scoped memory for tpu_custom_call.1']
    #allocation5 [shape = 's32[1]{0}', space=sflag, size = 0x4, scoped, tag = 'scoped memory for tpu_custom_call.1']
    #allocation6 [shape = 'u8[8192]{0}', space=vmem, size = 0x2000, scoped, tag = 'input window, operand 1, single buffered']
    #allocation7 [shape = 's32[1]{0}', space=sflag, size = 0x4, scoped, tag = 'scoped memory for tpu_custom_call.1']
    #allocation8 [shape = 'u8[512]{0}', space=vmem, size = 0x400, scoped, tag = 'output window, operand 0, single buffered']
    %11 = vsyncpa [#allocation4], 0
    %12 = vsyncpa [#allocation7], 0
    %13 = vsyncpa [#allocation5], 0
    // Predicated region
    $region2: #{tpu_custom_call.1} parent=1 // pred_check
      _
    $region3: #{tpu_custom_call.1} parent=1 // pred_check_branch
      %15 = sbr.rel (0) target = $region5
    $region4: #{tpu_custom_call.1} parent=1 // pred_region
      %17 = vsyncadd [#allocation4], 0
      %s19 = sshll.u32 %s0, 4
      %s20 = int_to_ptr.hbm [resolvable:$true] %s19
      %s21 = sshll.u32 [#allocation3], 4
      %s22 = int_to_ptr.vmem [resolvable:$true] %s21
      %24 = dma.hbm_to_vmem [thread:$0]  %s20, 128, %s22, [#allocation4]
    $region5: #{tpu_custom_call.1} parent=1 // pred_fallthru
      _
    // Predicated region
    $region6: #{tpu_custom_call.1} parent=1 // pred_check
      _
    $region7: #{tpu_custom_call.1} parent=1 // pred_check_branch
      %26 = sbr.rel (0) target = $region9
    $region8: #{tpu_custom_call.1} parent=1 // pred_region
      %28 = vsyncadd [#allocation7], 0
      %s29 = sshll.u32 %s1, 4
      %s30 = int_to_ptr.hbm [resolvable:$true] %s29
      %s31 = sshll.u32 [#allocation6], 4
      %s32 = int_to_ptr.vmem [resolvable:$true] %s31
      %37 = dma.hbm_to_vmem [thread:$0]  %s30, 256, %s32, [#allocation7], 128, 128, 8
    $region9: #{tpu_custom_call.1} parent=1 // pred_fallthru
      _
    // Predicated region
    $region10: #{tpu_custom_call.1} parent=1 // pred_check
      _
    $region11: #{tpu_custom_call.1} parent=1 // pred_check_branch
      %39 = sbr.rel (0) target = $region13
    $region12: #{tpu_custom_call.1} parent=1 // pred_region
      _
    $region13: #{tpu_custom_call.1} parent=1 // pred_fallthru
      _
    // Predicated region
    $region14: #{tpu_custom_call.1} parent=1 // pred_check
      _
    $region15: #{tpu_custom_call.1} parent=1 // pred_check_branch
      %41 = sbr.rel (0) target = $region17
    $region16: #{tpu_custom_call.1} parent=1 // pred_region
      _
    $region17: #{tpu_custom_call.1} parent=1 // pred_fallthru
      _
    // Predicated region
    $region18: #{tpu_custom_call.1} parent=1 // pred_check
      _
    $region19: #{tpu_custom_call.1} parent=1 // pred_check_branch
      %43 = sbr.rel (0) target = $region21
    $region20: #{tpu_custom_call.1} parent=1 // pred_region
      _
    $region21: #{tpu_custom_call.1} parent=1 // pred_fallthru
      _
    // Predicated region
    $region22: #{tpu_custom_call.1} parent=1 // pred_check
      _
    $region23: #{tpu_custom_call.1} parent=1 // pred_check_branch
      %45 = sbr.rel (0) target = $region25
    $region24: #{tpu_custom_call.1} parent=1 // pred_region
      %47 = dma.done [#allocation4], 128
    $region25: #{tpu_custom_call.1} parent=1 // pred_fallthru
      _
    // Predicated region
    $region26: #{tpu_custom_call.1} parent=1 // pred_check
      _
    $region27: #{tpu_custom_call.1} parent=1 // pred_check_branch
      %49 = sbr.rel (0) target = $region29
    $region28: #{tpu_custom_call.1} parent=1 // pred_region
      %51 = dma.done [#allocation7], 256
    $region29: #{tpu_custom_call.1} parent=1 // pred_fallthru
      _
    %v52 = vld [vmem:[#allocation3] sm:$0xff]
    %v53 = vld [vmem:[#allocation6] sm:$0xff]
    %v54 = vld [vmem:[#allocation6 + $0x8] sm:$0x1f]
    %v55 = vld [vmem:[%s2] sm:$0x1]
    %v57 = vperm.slane %v55, 0
    %vm59 = vcmask 105472
    %v61 = vsel %vm59, %v52, 0
    %vm63 = vcmask 1044480
    %v65 = vsel %vm63, %v54, 0
    %67 = vmatpush.msra.mxu0 0.0
    %68 = vmatpush.msra.mxu0 0.0
    %69 = vmatpush.msra.mxu0 0.0
    %70 = vmatpush.msra.mxu0 0.0
    %71 = vmatpush.msra.mxu0 0.0
    %72 = vmatpush.msra.mxu0 0.0
    %73 = vmatpush.msra.mxu0 0.0
    %74 = vmatpush.msra.mxu0 0.0
    %75 = vmatpush.msra.mxu0 0.0
    %76 = vmatpush.msra.mxu0 0.0
    %77 = vmatpush.msra.mxu0 0.0
    %78 = vmatpush.msra.mxu0 0.0
    %79 = vmatpush.msra.mxu0 0.0
    %80 = vmatpush.msra.mxu0 0.0
    %81 = vmatpush.msra.mxu0 %v65
    %82 = vmatpush.msra.mxu0 %v53
    %83 = vmatmul.f32.gmra.mxu0 %v61
    %v84 = vpop.f32.mrf.mxu0
    %v85 = vadd.f32 %v57, %v84
    %86 = vdwg.mxu0
    %v87 = vmax.f32 %v85, 0.0
    %v88 = vld [vmem:[%s3] sm:$0x1]
    %s89 = sld [smem:[#allocation2]]
    %v90 = vstv %s89
    %vm91 = vcmask 80896
    %v93 = vsel %vm91, %v88, 0
    %v96 = vsel %vm91, %v87, 0
    %98 = vmatpush.xpose.msra.mxu0 0.0
    %99 = vmatpush.xpose.msra.mxu0 0.0
    %100 = vmatpush.xpose.msra.mxu0 0.0
    %101 = vmatpush.xpose.msra.mxu0 0.0
    %102 = vmatpush.xpose.msra.mxu0 0.0
    %103 = vmatpush.xpose.msra.mxu0 0.0
    %104 = vmatpush.xpose.msra.mxu0 0.0
    %105 = vmatpush.xpose.msra.mxu0 0.0
    %106 = vmatpush.xpose.msra.mxu0 0.0
    %107 = vmatpush.xpose.msra.mxu0 0.0
    %108 = vmatpush.xpose.msra.mxu0 0.0
    %109 = vmatpush.xpose.msra.mxu0 0.0
    %110 = vmatpush.xpose.msra.mxu0 0.0
    %111 = vmatpush.xpose.msra.mxu0 0.0
    %112 = vmatpush.xpose.msra.mxu0 0.0
    %113 = vmatpush.xpose.msra.mxu0 %v96
    %114 = vmatmul.f32.gmra.mxu0 %v93
    %v115 = vpop.f32.mrf.mxu0
    %v116 = vadd.f32 %v90, %v115
    %117 = vdwg.mxu0
    %vm118 = vcmask 57344
    %119 = vst.msk [vmem:[#allocation8] sm:$0x1] %vm118, %v116
    // Predicated region
    $region30: #{tpu_custom_call.1} parent=1 // pred_check
      _
    $region31: #{tpu_custom_call.1} parent=1 // pred_check_branch
      %121 = sbr.rel (0) target = $region33
    $region32: #{tpu_custom_call.1} parent=1 // pred_region
      %123 = vsyncadd [#allocation5], 0
      %s125 = sshll.u32 [#allocation8], 4
      %s126 = int_to_ptr.vmem [resolvable:$true] %s125
      %s127 = sshll.u32 %s5, 4
      %s128 = int_to_ptr.hbm [resolvable:$true] %s127
      %130 = dma.vmem_to_hbm [thread:$0]  %s126, 16, %s128, [#allocation5]
    $region33: #{tpu_custom_call.1} parent=1 // pred_fallthru
      _
    // Predicated region
    $region34: #{tpu_custom_call.1} parent=1 // pred_check
      _
    $region35: #{tpu_custom_call.1} parent=1 // pred_check_branch
      %132 = sbr.rel (0) target = $region37
    $region36: #{tpu_custom_call.1} parent=1 // pred_region
      %134 = dma.done [#allocation5], 16
    $region37: #{tpu_custom_call.1} parent=1 // pred_fallthru
      _
    %135 = vsyncpa [#allocation4], 1
    %136 = vsyncpa [#allocation7], 1
    %137 = vsyncpa [#allocation5], 1

</llo_original>
